<compile_context>
chip_gen: v7x
topology: tpu7x:2x2x1
jax: 0.10.0
libtpu: 0.0.40
codegen_flags: <defaults>
</compile_context>

<pallas_src>
import numpy as np
import jax
import jax.numpy as jnp
from jax import lax
from jax.experimental import pallas as pl
from jax.experimental.pallas import tpu as pltpu

N_KNOTS = 66          # len(linspace(0, 1, 66))
N_MACHINES = 10       # self.total
HIDDEN = 10           # Linear(10, 10)

# initial_values from the PyTorch module (logits of spline eval points)
INITIAL_VALUES = np.array(
    [-4.19722458, -1.38629436, -0.84729786, -0.40546511, 0.40546511,
      0.84729786,  1.38629436,  2.19722458,  3.04452244, 6.60517019],
    dtype=np.float64)


def build_spline_eval_matrix(eval_points, n=N_KNOTS):
    """Matrix E (num_points, n) s.t. E @ y = natural-cubic-spline(y)(eval_points)
    for uniform knots linspace(0, 1, n).  Pure setup glue (numpy)."""
    h = 1.0 / (n - 1)
    # Tridiagonal system for interior second derivatives M (natural BC: M0=Mn-1=0)
    A = np.zeros((n - 2, n - 2), dtype=np.float64)
    for i in range(n - 2):
        A[i, i] = 4.0 * h
        if i > 0:
            A[i, i - 1] = h
        if i < n - 3:
            A[i, i + 1] = h
    D = np.zeros((n - 2, n), dtype=np.float64)   # second-difference operator
    for i in range(n - 2):
        D[i, i], D[i, i + 1], D[i, i + 2] = 1.0, -2.0, 1.0
    G = np.zeros((n, n), dtype=np.float64)       # M = G @ y
    G[1:n - 1] = np.linalg.solve(A, (6.0 / h) * D)

    knots = np.linspace(0.0, 1.0, n)
    E = np.zeros((len(eval_points), n), dtype=np.float64)
    for idx, t in enumerate(eval_points):
        k = int(np.clip(np.floor(t / h), 0, n - 2))
        tk, tk1 = knots[k], knots[k + 1]
        row = np.zeros(n, dtype=np.float64)
        row[k] += (tk1 - t) / h
        row[k + 1] += (t - tk) / h
        wMk = ((tk1 - t) ** 3) / (6.0 * h) - h * (tk1 - t) / 6.0
        wMk1 = ((t - tk) ** 3) / (6.0 * h) - h * (t - tk) / 6.0
        row += wMk * G[k] + wMk1 * G[k + 1]
        E[idx] = row
    return E.astype(np.float32)


def ann_kernel(x_ref, m1_ref, b1_ref, w2_ref, b2_ref, out_ref):
    """Per-batch-tile hot path:
         h     = leaky_relu(x @ M1 + b1)        (spline+Linear1 folded into M1)
         out^T = W2 @ h^T + b2                  (lane-dense (1, tile_b) output)
    """
    x = x_ref[...]                                                   # (TB, 66)
    h = jnp.dot(x, m1_ref[...],
                preferred_element_type=jnp.float32) + b1_ref[...]    # (TB, 10)
    h = jnp.where(h >= 0, h, 0.01 * h)                               # LeakyReLU(0.01)
    out_t = lax.dot_general(                                         # W2 @ h^T
        w2_ref[...], h,
        dimension_numbers=(((1,), (1,)), ((), ())),
        preferred_element_type=jnp.float32)                          # (1, TB)
    out_ref[...] = out_t + b2_ref[0, 0]


def ann_forward(x, M1, b1, W2, b2, *, tile_b=4096):
    """x: (B, 66) f32; M1: (66,10); b1: (1,10); W2: (1,10); b2: (1,1) -> (B,)"""
    B = x.shape[0]
    tile_b = min(tile_b, B)
    if tile_b < B:
        # output block last dim must be a multiple of 128 (or the full extent)
        tile_b = max(128, (tile_b // 128) * 128)
    grid = (pl.cdiv(B, tile_b),)

    out = pl.pallas_call(
        ann_kernel,
        out_shape=jax.ShapeDtypeStruct((1, B), jnp.float32),
        grid=grid,
        in_specs=[
            pl.BlockSpec((tile_b, N_KNOTS), lambda i: (i, 0)),        # x tile
            pl.BlockSpec((N_KNOTS, HIDDEN), lambda i: (0, 0)),        # M1 (resident)
            pl.BlockSpec((1, HIDDEN), lambda i: (0, 0)),              # b1 (resident)
            pl.BlockSpec((1, HIDDEN), lambda i: (0, 0)),              # W2 (resident)
            pl.BlockSpec(memory_space=pltpu.MemorySpace.SMEM),        # b2 scalar
        ],
        out_specs=pl.BlockSpec((1, tile_b), lambda i: (0, i)),        # lane-dense
        compiler_params=pltpu.CompilerParams(
            dimension_semantics=("parallel",)),
    )(x, M1, b1, W2, b2)
    return out.reshape(-1)   # soc_hat.reshape(-1)


if __name__ == "__main__":
    key = jax.random.PRNGKey(0)
    kx, kw1, kb1, kw2, kb2 = jax.random.split(key, 5)

    B = 256
    # synthetic input consistent with self.indices = linspace(0, 1, 66)
    x = jax.random.uniform(kx, (B, N_KNOTS), dtype=jnp.float32)

    # machine eval points: sigmoid(initial_values)  (all in (0, 1))
    eval_points = 1.0 / (1.0 + np.exp(-INITIAL_VALUES))
    E = build_spline_eval_matrix(eval_points)            # (10, 66) float32

    # deterministic Linear inits (PyTorch-style uniform(-1/sqrt(fan_in), +))
    bound1 = 1.0 / np.sqrt(N_MACHINES)
    W1 = jax.random.uniform(kw1, (HIDDEN, N_MACHINES), jnp.float32, -bound1, bound1)
    b1 = jax.random.uniform(kb1, (1, HIDDEN), jnp.float32, -bound1, bound1)
    bound2 = 1.0 / np.sqrt(HIDDEN)
    W2 = jax.random.uniform(kw2, (1, HIDDEN), jnp.float32, -bound2, bound2)
    b2 = jax.random.uniform(kb2, (1, 1), jnp.float32, -bound2, bound2)

    # Offline fold: spline-eval (66->10) and Linear1 (10->10) collapse exactly
    # into one (66, 10) matrix (both stages are linear). Folded in float64.
    M1 = jnp.asarray(
        np.asarray(E, np.float64).T @ np.asarray(W1, np.float64).T,
        dtype=jnp.float32)                               # (66, 10)

    # tile_b=128 -> grid of 2 batch tiles, exercising the pipelined grid path.
    soc_hat = ann_forward(x, M1, b1, W2, b2, tile_b=128)
    soc_hat = jax.block_until_ready(soc_hat)

    # pure-JAX reference of the unfolded math (sanity check of the kernel)
    E_T = jnp.asarray(E.T)                               # (66, 10)
    feats_ref = x @ E_T
    h1_ref = feats_ref @ W1.T + b1
    h1_ref = jnp.where(h1_ref >= 0, h1_ref, 0.01 * h1_ref)
    ref = (h1_ref @ W2.T + b2).reshape(-1)

    assert soc_hat.shape == (B,)
    assert np.allclose(np.asarray(soc_hat), np.asarray(ref), rtol=1e-4, atol=1e-4)

    print("KERNEL_OK")
</pallas_src>

<mosaic_0001>
module attributes {stable_mosaic.version = 11 : i64} {
  func.func @ann_kernel(%arg0: i32, %arg1: memref<128x66xf32, #tpu.memory_space<vmem>>, %arg2: memref<66x10xf32, #tpu.memory_space<vmem>>, %arg3: memref<1x10xf32, #tpu.memory_space<vmem>>, %arg4: memref<1x10xf32, #tpu.memory_space<vmem>>, %arg5: memref<1x1xf32, #tpu.memory_space<smem>>, %arg6: memref<1x128xf32, #tpu.memory_space<vmem>>) attributes {dimension_semantics = [#tpu.dimension_semantics<parallel>], iteration_bounds = array<i64: 2>, scalar_prefetch = 0 : i64, scratch_operands = 0 : i64, tpu.core_type = #tpu.core_type<tc>, window_params = [{transform_indices = @transform_0, window_bounds = array<i64: 128, 66>}, {pipeline_mode = #tpu.pipeline_mode<synchronous>, transform_indices = @transform_1, window_bounds = array<i64: 66, 10>}, {pipeline_mode = #tpu.pipeline_mode<synchronous>, transform_indices = @transform_2, window_bounds = array<i64: 1, 10>}, {pipeline_mode = #tpu.pipeline_mode<synchronous>, transform_indices = @transform_3, window_bounds = array<i64: 1, 10>}, {transform_indices = @transform_4, window_bounds = array<i64: 1, 1>}, {transform_indices = @transform_5, window_bounds = array<i64: 1, 128>}]} {
    %c0 = arith.constant 0 : index
    %c0_0 = arith.constant 0 : index
    %0 = vector.load %arg1[%c0, %c0_0] : memref<128x66xf32, #tpu.memory_space<vmem>>, vector<128x66xf32>
    %c0_1 = arith.constant 0 : index
    %c0_2 = arith.constant 0 : index
    %1 = vector.load %arg2[%c0_1, %c0_2] : memref<66x10xf32, #tpu.memory_space<vmem>>, vector<66x10xf32>
    %cst = arith.constant dense<0.000000e+00> : vector<128x10xf32>
    %2 = tpu.matmul %0, %1, %cst {dimension_numbers = #tpu.dot_dimension_numbers<[1], [0], [0], [1], [0, 0, 1, 1], [], []>} : vector<128x66xf32>, vector<66x10xf32>, vector<128x10xf32> -> vector<128x10xf32>
    %c0_3 = arith.constant 0 : index
    %c0_4 = arith.constant 0 : index
    %3 = vector.load %arg3[%c0_3, %c0_4] : memref<1x10xf32, #tpu.memory_space<vmem>>, vector<1x10xf32>
    %4 = vector.broadcast %3 : vector<1x10xf32> to vector<128x10xf32>
    %5 = arith.addf %2, %4 : vector<128x10xf32>
    %cst_5 = arith.constant 0.000000e+00 : f32
    %6 = vector.broadcast %cst_5 : f32 to vector<128x10xf32>
    %7 = arith.cmpf oge, %5, %6 : vector<128x10xf32>
    %cst_6 = arith.constant 0.00999999977 : f32
    %8 = vector.broadcast %cst_6 : f32 to vector<128x10xf32>
    %9 = arith.mulf %8, %5 : vector<128x10xf32>
    %10 = arith.select %7, %5, %9 : vector<128x10xi1>, vector<128x10xf32>
    %c0_7 = arith.constant 0 : index
    %c0_8 = arith.constant 0 : index
    %11 = vector.load %arg4[%c0_7, %c0_8] : memref<1x10xf32, #tpu.memory_space<vmem>>, vector<1x10xf32>
    %cst_9 = arith.constant dense<0.000000e+00> : vector<1x128xf32>
    %12 = tpu.matmul %11, %10, %cst_9 {dimension_numbers = #tpu.dot_dimension_numbers<[1], [1], [0], [0], [0, 0, 1, 0], [], []>} : vector<1x10xf32>, vector<128x10xf32>, vector<1x128xf32> -> vector<1x128xf32>
    %c0_10 = arith.constant 0 : index
    %c0_11 = arith.constant 0 : index
    %13 = memref.load %arg5[%c0_10, %c0_11] : memref<1x1xf32, #tpu.memory_space<smem>>
    %14 = vector.broadcast %13 : f32 to vector<1x128xf32>
    %15 = arith.addf %12, %14 : vector<1x128xf32>
    %c0_12 = arith.constant 0 : index
    %c0_13 = arith.constant 0 : index
    %16 = vector.load %arg6[%c0_12, %c0_13] : memref<1x128xf32, #tpu.memory_space<vmem>>, vector<1x128xf32>
    tpu.vector_store %arg6[%c0_12, %c0_13], %15 {strides = array<i32>} : memref<1x128xf32, #tpu.memory_space<vmem>>, vector<1x128xf32>,
    return
  }
  func.func @transform_0(%arg0: i32) -> (i32, i32) {
    %c0_i32 = arith.constant 0 : i32
    %c0_i32_0 = arith.constant 0 : i32
    return %arg0, %c0_i32 : i32, i32
  }
  func.func @transform_1(%arg0: i32) -> (i32, i32) {
    %c0_i32 = arith.constant 0 : i32
    %c0_i32_0 = arith.constant 0 : i32
    %c0_i32_1 = arith.constant 0 : i32
    return %c0_i32, %c0_i32_0 : i32, i32
  }
  func.func @transform_2(%arg0: i32) -> (i32, i32) {
    %c0_i32 = arith.constant 0 : i32
    %c0_i32_0 = arith.constant 0 : i32
    %c0_i32_1 = arith.constant 0 : i32
    return %c0_i32, %c0_i32_0 : i32, i32
  }
  func.func @transform_3(%arg0: i32) -> (i32, i32) {
    %c0_i32 = arith.constant 0 : i32
    %c0_i32_0 = arith.constant 0 : i32
    %c0_i32_1 = arith.constant 0 : i32
    return %c0_i32, %c0_i32_0 : i32, i32
  }
  func.func @transform_4(%arg0: i32) -> (i32, i32) {
    %c0_i32 = arith.constant 0 : i32
    %c0_i32_0 = arith.constant 0 : i32
    %c0_i32_1 = arith.constant 0 : i32
    return %c0_i32, %c0_i32_0 : i32, i32
  }
  func.func @transform_5(%arg0: i32) -> (i32, i32) {
    %c0_i32 = arith.constant 0 : i32
    %c0_i32_0 = arith.constant 0 : i32
    return %c0_i32, %arg0 : i32, i32
  }
}

</mosaic_0001>

<llo_original>
// kernel: tpu_custom_call.1
$region0: #{tpu_custom_call.1}
  #allocation0 [shape = 'u32[]', space=smem, size = 0x4, offset = 0x4, fixed_abs, tag = 'smem constant byte address 0x4 - core index']
  #allocation1 [shape = 'u32[144,128]{1,0:T(1,128)}', space=vmem, size = 0x12000, scoped, tag = 'internal scratch']
  #allocation2 [shape = 'f32[1,1]{1,0:T(1,128)S(6)}', space=smem, size = 0x200, scoped, tag = 'scoped memory for tpu_custom_call.1']
  %s0 = inlined_call_operand.vmem [shape: f32[256,66], index: 0, kind: input, shape index: {}]
  %s1 = inlined_call_operand.vmem [shape: f32[66,10], index: 1, kind: input, shape index: {}]
  %s2 = inlined_call_operand.vmem [shape: f32[1,10], index: 2, kind: input, shape index: {}]
  %s3 = inlined_call_operand.vmem [shape: f32[1,10], index: 3, kind: input, shape index: {}]
  %s4 = inlined_call_operand.<no memory space> [shape: f32[1,1], index: 4, kind: input, shape index: {}]
  %s5 = inlined_call_operand.hbm [shape: f32[1,256], index: 5, kind: output, shape index: {}]
  %s6 = sld [smem:[#allocation0]]
  $region53: #{tpu_custom_call.1} parent=0
    _
  %s8 = ssub.s32 1, %s6
  %s9 = scalar_select 0, %s8, %s6
  %10 = sst [smem:[#allocation2]] %s4
  $region1: #{tpu_custom_call.1} parent=0
    #allocation3 [shape = 'u8[1024]{0}', space=vmem, size = 0x400, scoped, tag = 'output window, operand 0']
    #allocation4 [shape = 's32[2]{0}', space=sflag, size = 0x8, scoped, tag = 'scoped memory for tpu_custom_call.1']
    %11 = vsyncpa [#allocation4], 0
    %s12 = scalar_lea.sflag [#allocation4], 1
    %13 = vsyncpa %s12, 0
    loop: start=0, step=1, limit=4
    $region2: #{tpu_custom_call.1} parent=1 // loop_pre_header
      _
    $region3: #{tpu_custom_call.1} parent=1 // loop_header
      %s15 = sphi 0, %s19
      %p16 = scmp.ge.s32.totalorder %s15, 4
      %s25 = sphi 0, %s27
      %s28 = sphi 0, %s25
      %s29 = sphi 0, %s28
      %s45 = sphi 0, %s29
      %s49 = sphi 0, %s49
      %s51 = sphi 0, %s49
      %s52 = sphi 0, %s51
      %s66 = sphi 0, %s52
      %s70 = sphi 0, %s70
      %s72 = sphi 0, %s70
      %s73 = sphi 0, %s72
      %s87 = sphi 0, %s73
      %s91 = sphi 0, %s91
      %s93 = sphi 0, %s91
      %s94 = sphi 0, %s93
      %s108 = sphi 0, %s94
      %s112 = sphi 0, %s112
      %s114 = sphi 0, %s112
      %s115 = sphi 0, %s114
      %s129 = sphi 0, %s115
      %s135 = sphi 0, %s137
      %s138 = sphi 0, %s135
      %s139 = sphi 0, %s138
      %s155 = sphi 0, %s139
    $region4: #{tpu_custom_call.1} parent=1 // loop_header_branch
      %18 = sbr.rel (%p16) target = $region8
    $region5: #{tpu_custom_call.1} parent=1 // loop_body
      %s20 = ssub.s32 %s15, 1
      %s21 = ssub.s32 %s15, 2
      %s22 = sadd.s32 %s15, 1
      %s23 = ssub.s32 %s15, %s22
      %p24 = scmp.eq.s32.totalorder %s23, 0
      %s26 = sadd.s32 %s25, 1
      %s27 = scalar_select %p24, %s25, %s26
      %p30 = pneg %p24
      %p31 = scmp.eq.s32.totalorder %s15, 1
      %p32 = por %p30, %p31
      %p33 = scmp.ne.s32.totalorder %s25, %s28
      %p34 = scmp.eq.s32.totalorder %s15, 0
      %p35 = por %p33, %p34
      %p36 = scmp.ne.s32.totalorder %s25, %s28
      %p37 = scmp.eq.s32.totalorder %s20, 1
      %p38 = por %p36, %p37
      %p39 = scmp.ne.s32.totalorder %s28, %s29
      %p40 = scmp.eq.s32.totalorder %s20, 0
      %p41 = por %p39, %p40
      %p42 = scmp.ne.s32.totalorder %s28, %s29
      %p43 = scmp.eq.s32.totalorder %s21, 1
      %p44 = por %p42, %p43
      %p46 = scmp.ne.s32.totalorder %s29, %s45
      %p47 = scmp.eq.s32.totalorder %s21, 0
      %p48 = por %p46, %p47
      %s50 = sadd.s32 %s49, 1
      %p53 = scmp.eq.s32.totalorder %s15, 1
      %p54 = scmp.ne.s32.totalorder %s49, %s51
      %p55 = scmp.eq.s32.totalorder %s15, 0
      %p56 = por %p54, %p55
      %p57 = scmp.ne.s32.totalorder %s49, %s51
      %p58 = scmp.eq.s32.totalorder %s20, 1
      %p59 = por %p57, %p58
      %p60 = scmp.ne.s32.totalorder %s51, %s52
      %p61 = scmp.eq.s32.totalorder %s20, 0
      %p62 = por %p60, %p61
      %p63 = scmp.ne.s32.totalorder %s51, %s52
      %p64 = scmp.eq.s32.totalorder %s21, 1
      %p65 = por %p63, %p64
      %p67 = scmp.ne.s32.totalorder %s52, %s66
      %p68 = scmp.eq.s32.totalorder %s21, 0
      %p69 = por %p67, %p68
      %s71 = sadd.s32 %s70, 1
      %p74 = scmp.eq.s32.totalorder %s15, 1
      %p75 = scmp.ne.s32.totalorder %s70, %s72
      %p76 = scmp.eq.s32.totalorder %s15, 0
      %p77 = por %p75, %p76
      %p78 = scmp.ne.s32.totalorder %s70, %s72
      %p79 = scmp.eq.s32.totalorder %s20, 1
      %p80 = por %p78, %p79
      %p81 = scmp.ne.s32.totalorder %s72, %s73
      %p82 = scmp.eq.s32.totalorder %s20, 0
      %p83 = por %p81, %p82
      %p84 = scmp.ne.s32.totalorder %s72, %s73
      %p85 = scmp.eq.s32.totalorder %s21, 1
      %p86 = por %p84, %p85
      %p88 = scmp.ne.s32.totalorder %s73, %s87
      %p89 = scmp.eq.s32.totalorder %s21, 0
      %p90 = por %p88, %p89
      %s92 = sadd.s32 %s91, 1
      %p95 = scmp.eq.s32.totalorder %s15, 1
      %p96 = scmp.ne.s32.totalorder %s91, %s93
      %p97 = scmp.eq.s32.totalorder %s15, 0
      %p98 = por %p96, %p97
      %p99 = scmp.ne.s32.totalorder %s91, %s93
      %p100 = scmp.eq.s32.totalorder %s20, 1
      %p101 = por %p99, %p100
      %p102 = scmp.ne.s32.totalorder %s93, %s94
      %p103 = scmp.eq.s32.totalorder %s20, 0
      %p104 = por %p102, %p103
      %p105 = scmp.ne.s32.totalorder %s93, %s94
      %p106 = scmp.eq.s32.totalorder %s21, 1
      %p107 = por %p105, %p106
      %p109 = scmp.ne.s32.totalorder %s94, %s108
      %p110 = scmp.eq.s32.totalorder %s21, 0
      %p111 = por %p109, %p110
      %s113 = sadd.s32 %s112, 1
      %p116 = scmp.eq.s32.totalorder %s15, 1
      %p117 = scmp.ne.s32.totalorder %s112, %s114
      %p118 = scmp.eq.s32.totalorder %s15, 0
      %p119 = por %p117, %p118
      %p120 = scmp.ne.s32.totalorder %s112, %s114
      %p121 = scmp.eq.s32.totalorder %s20, 1
      %p122 = por %p120, %p121
      %p123 = scmp.ne.s32.totalorder %s114, %s115
      %p124 = scmp.eq.s32.totalorder %s20, 0
      %p125 = por %p123, %p124
      %p126 = scmp.ne.s32.totalorder %s114, %s115
      %p127 = scmp.eq.s32.totalorder %s21, 1
      %p128 = por %p126, %p127
      %p130 = scmp.ne.s32.totalorder %s115, %s129
      %p131 = scmp.eq.s32.totalorder %s21, 0
      %p132 = por %p130, %p131
      %s133 = ssub.s32 %s15, %s22
      %p134 = scmp.eq.s32.totalorder %s133, 0
      %s136 = sadd.s32 %s135, 1
      %s137 = scalar_select %p134, %s135, %s136
      %p140 = pneg %p134
      %p141 = scmp.eq.s32.totalorder %s15, 1
      %p142 = por %p140, %p141
      %p143 = scmp.ne.s32.totalorder %s135, %s138
      %p144 = scmp.eq.s32.totalorder %s15, 0
      %p145 = por %p143, %p144
      %p146 = scmp.ne.s32.totalorder %s135, %s138
      %p147 = scmp.eq.s32.totalorder %s20, 1
      %p148 = por %p146, %p147
      %p149 = scmp.ne.s32.totalorder %s138, %s139
      %p150 = scmp.eq.s32.totalorder %s20, 0
      %p151 = por %p149, %p150
      %p152 = scmp.ne.s32.totalorder %s138, %s139
      %p153 = scmp.eq.s32.totalorder %s21, 1
      %p154 = por %p152, %p153
      %p156 = scmp.ne.s32.totalorder %s139, %s155
      %p157 = scmp.eq.s32.totalorder %s21, 0
      %p158 = por %p156, %p157
      %p159 = scmp.le.s32.totalorder 1, %s15
      %p160 = scmp.lt.s32.totalorder %s15, 3
      %p161 = pnand %p159, %p160
      %p162 = pneg %p161
      // Predicated region
      $region9: #{tpu_custom_call.1} parent=5 // pred_check
        _
      $region10: #{tpu_custom_call.1} parent=5 // pred_check_branch
        %164 = sbr.rel (%p161) target = $region12
      $region11: #{tpu_custom_call.1} parent=5 // pred_region
        %s165 = ssub.s32 %s15, 1
        // Predicated region
        $region13: #{tpu_custom_call.1} parent=11 // pred_check
          %p166 = pneg %p62
        $region14: #{tpu_custom_call.1} parent=11 // pred_check_branch
          %168 = sbr.rel (%p166) target = $region16
        $region15: #{tpu_custom_call.1} parent=11 // pred_region
          _
        $region16: #{tpu_custom_call.1} parent=11 // pred_fallthru
          _
        // Predicated region
        $region17: #{tpu_custom_call.1} parent=11 // pred_check
          %p169 = pneg %p83
        $region18: #{tpu_custom_call.1} parent=11 // pred_check_branch
          %171 = sbr.rel (%p169) target = $region20
        $region19: #{tpu_custom_call.1} parent=11 // pred_region
          _
        $region20: #{tpu_custom_call.1} parent=11 // pred_fallthru
          _
        // Predicated region
        $region21: #{tpu_custom_call.1} parent=11 // pred_check
          %p172 = pneg %p104
        $region22: #{tpu_custom_call.1} parent=11 // pred_check_branch
          %174 = sbr.rel (%p172) target = $region24
        $region23: #{tpu_custom_call.1} parent=11 // pred_region
          _
        $region24: #{tpu_custom_call.1} parent=11 // pred_fallthru
          _
        // Predicated region
        $region25: #{tpu_custom_call.1} parent=11 // pred_check
          %p175 = pneg %p125
        $region26: #{tpu_custom_call.1} parent=11 // pred_check_branch
          %177 = sbr.rel (%p175) target = $region28
        $region27: #{tpu_custom_call.1} parent=11 // pred_region
          _
        $region28: #{tpu_custom_call.1} parent=11 // pred_fallthru
          _
      $region12: #{tpu_custom_call.1} parent=5 // pred_fallthru
        _
      %p178 = scmp.lt.s32.totalorder %s15, 2
      // Predicated region
      $region29: #{tpu_custom_call.1} parent=5 // pred_check
        %p179 = pneg %p178
      $region30: #{tpu_custom_call.1} parent=5 // pred_check_branch
        %181 = sbr.rel (%p179) target = $region32
      $region31: #{tpu_custom_call.1} parent=5 // pred_region
        // Predicated region
        $region33: #{tpu_custom_call.1} parent=31 // pred_check
          %p182 = pneg %p35
        $region34: #{tpu_custom_call.1} parent=31 // pred_check_branch
          %184 = sbr.rel (%p182) target = $region36
        $region35: #{tpu_custom_call.1} parent=31 // pred_region
          %s185 = smul.u32 16, %s15
          %p186 = scmp.lt.s32.totalorder %s185, 31
          %s187 = scalar_select %p186, %s185, 31
          %s188 = smul.addr %s187, 8
          %s189 = scalar_lea.vmem %s0, %s188
          %s190 = smul.u32 16, %s15
        $region36: #{tpu_custom_call.1} parent=31 // pred_fallthru
          _
      $region32: #{tpu_custom_call.1} parent=5 // pred_fallthru
        _
      %p191 = scmp.le.s32.totalorder 1, %s15
      %p192 = scmp.lt.s32.totalorder %s15, 3
      %p193 = pnand %p191, %p192
      %p194 = pneg %p193
      // Predicated region
      $region37: #{tpu_custom_call.1} parent=5 // pred_check
        _
      $region38: #{tpu_custom_call.1} parent=5 // pred_check_branch
        %196 = sbr.rel (%p193) target = $region40
      $region39: #{tpu_custom_call.1} parent=5 // pred_region
        %s197 = ssub.s32 %s15, 1
        %s198 = smul.u32 16, %s20
        %p199 = scmp.lt.s32.totalorder %s198, 31
        %s200 = scalar_select %p199, %s198, 31
        %s201 = smul.addr %s200, 8
        %s202 = scalar_lea.vmem %s0, %s201
        %p203 = pneg %p41
        %p204 = pneg %p38
        %p205 = pneg %p62
        %p206 = pneg %p59
        %p207 = pneg %p83
        %p208 = pneg %p80
        %p209 = pneg %p104
        %p210 = pneg %p101
        %p211 = pneg %p125
        %p212 = pneg %p122
        %p213 = pneg %p151
        %p214 = pneg %p148
        %s215 = sand.u32 %s138, 1
        %s216 = scalar_lea.sflag [#allocation4], %s215
        %s217 = sand.u32 %s138, 1
        %s218 = scalar_lea.vmem [#allocation3], %s217
        %s219 = smul.u32 16, %s20
        %p220 = scmp.lt.s32.totalorder %s219, 31
        %s221 = scalar_select %p220, %s219, 31
        %s222 = smul.addr %s221, 8
        %s223 = scalar_lea.vmem %s0, %s222
        %s224 = smul.u32 16, %s20
        %v225 = vld [vmem:[%s223] sm:$0xff]
        %v226 = vld [vmem:[%s223 + $0x8] sm:$0xff]
        %v227 = vld [vmem:[%s223 + $0x10] sm:$0xff]
        %v228 = vld [vmem:[%s223 + $0x18] sm:$0xff]
        %v229 = vld [vmem:[%s223 + $0x20] sm:$0xff]
        %v230 = vld [vmem:[%s223 + $0x28] sm:$0xff]
        %v231 = vld [vmem:[%s223 + $0x30] sm:$0xff]
        %v232 = vld [vmem:[%s223 + $0x38] sm:$0xff]
        %v233 = vld [vmem:[%s223 + $0x40] sm:$0xff]
        %v234 = vld [vmem:[%s223 + $0x48] sm:$0xff]
        %v235 = vld [vmem:[%s223 + $0x50] sm:$0xff]
        %v236 = vld [vmem:[%s223 + $0x58] sm:$0xff]
        %v237 = vld [vmem:[%s223 + $0x60] sm:$0xff]
        %v238 = vld [vmem:[%s223 + $0x68] sm:$0xff]
        %v239 = vld [vmem:[%s223 + $0x70] sm:$0xff]
        %v240 = vld [vmem:[%s223 + $0x78] sm:$0xff]
        %v241 = vld [vmem:[%s1] sm:$0xff]
        %v242 = vld [vmem:[%s1 + $0x8] sm:$0xff]
        %v243 = vld [vmem:[%s1 + $0x10] sm:$0xff]
        %v244 = vld [vmem:[%s1 + $0x18] sm:$0xff]
        %v245 = vld [vmem:[%s1 + $0x20] sm:$0xff]
        %v246 = vld [vmem:[%s1 + $0x28] sm:$0xff]
        %v247 = vld [vmem:[%s1 + $0x30] sm:$0xff]
        %v248 = vld [vmem:[%s1 + $0x38] sm:$0xff]
        %v249 = vld [vmem:[%s1 + $0x40] sm:$0x3]
        %v250 = vld [vmem:[%s2] sm:$0x1]
        %v252 = vlaneseq
        %v253 = vshrl.u32 %v252, 7
        %v254 = vsub.s32 0, %v253
        %v255 = vrot.slane %v250, %v254
        %vm257 = vcmask 539648
        %v259 = vsel %vm257, %v225, 0
        %v262 = vsel %vm257, %v226, 0
        %v265 = vsel %vm257, %v227, 0
        %v268 = vsel %vm257, %v228, 0
        %v271 = vsel %vm257, %v229, 0
        %v274 = vsel %vm257, %v230, 0
        %v277 = vsel %vm257, %v231, 0
        %v280 = vsel %vm257, %v232, 0
        %v283 = vsel %vm257, %v233, 0
        %v286 = vsel %vm257, %v234, 0
        %v289 = vsel %vm257, %v235, 0
        %v292 = vsel %vm257, %v236, 0
        %v295 = vsel %vm257, %v237, 0
        %v298 = vsel %vm257, %v238, 0
        %v301 = vsel %vm257, %v239, 0
        %v304 = vsel %vm257, %v240, 0
        %vm306 = vcmask 1041408
        %v308 = vsel %vm306, %v249, 0
        %310 = vmatprep.subr.mxu0 0.0
        %311 = vmatpush1.msra.mxu0 %v241
        %312 = vmatprep.subr.mxu0 0.0
        %313 = vmatpush1.msra.mxu0 %v242
        %314 = vmatprep.subr.mxu0 0.0
        %315 = vmatpush1.msra.mxu0 %v243
        %316 = vmatprep.subr.mxu0 0.0
        %317 = vmatpush1.msra.mxu0 %v244
        %318 = vmatprep.subr.mxu0 0.0
        %319 = vmatpush1.msra.mxu0 %v245
        %320 = vmatprep.subr.mxu0 0.0
        %321 = vmatpush1.msra.mxu0 %v246
        %322 = vmatprep.subr.mxu0 0.0
        %323 = vmatpush1.msra.mxu0 %v247
        %324 = vmatprep.subr.mxu0 0.0
        %325 = vmatpush1.msra.mxu0 %v248
        %326 = vmatprep.subr.mxu0 0.0
        %327 = vmatpush1.msra.mxu0 %v308
        %328 = vmatprep.subr.mxu0 0.0
        %329 = vmatpush1.msra.mxu0 0.0
        %330 = vmatprep.subr.mxu0 0.0
        %331 = vmatpush1.msra.mxu0 0.0
        %332 = vmatprep.subr.mxu0 0.0
        %333 = vmatpush1.msra.mxu0 0.0
        %334 = vmatprep.subr.mxu0 0.0
        %335 = vmatpush1.msra.mxu0 0.0
        %336 = vmatprep.subr.mxu0 0.0
        %337 = vmatpush1.msra.mxu0 0.0
        %338 = vmatprep.subr.mxu0 0.0
        %339 = vmatpush1.msra.mxu0 0.0
        %340 = vmatprep.subr.mxu0 0.0
        %341 = vmatpush1.msra.mxu0 0.0
        %342 = vmatprep.subr.mxu0 0.0
        %343 = vmatpush1.msra.mxu0 0.0
        %344 = vmatprep.subr.mxu0 0.0
        %345 = vmatpush1.msra.mxu0 0.0
        %346 = vmatprep.subr.mxu0 0.0
        %347 = vmatpush1.msra.mxu0 0.0
        %348 = vmatprep.subr.mxu0 0.0
        %349 = vmatpush1.msra.mxu0 0.0
        %350 = vmatprep.subr.mxu0 0.0
        %351 = vmatpush1.msra.mxu0 0.0
        %352 = vmatprep.subr.mxu0 0.0
        %353 = vmatpush1.msra.mxu0 0.0
        %354 = vmatprep.subr.mxu0 0.0
        %355 = vmatpush1.msra.mxu0 0.0
        %356 = vmatprep.subr.mxu0 0.0
        %357 = vmatpush1.msra.mxu0 0.0
        %358 = vmatprep.subr.mxu0 0.0
        %359 = vmatpush1.msra.mxu0 0.0
        %360 = vmatprep.subr.mxu0 0.0
        %361 = vmatpush1.msra.mxu0 0.0
        %362 = vmatprep.subr.mxu0 0.0
        %363 = vmatpush1.msra.mxu0 0.0
        %364 = vmatprep.subr.mxu0 0.0
        %365 = vmatpush1.msra.mxu0 0.0
        %366 = vmatprep.subr.mxu0 0.0
        %367 = vmatpush1.msra.mxu0 0.0
        %368 = vmatprep.subr.mxu0 0.0
        %369 = vmatpush1.msra.mxu0 0.0
        %370 = vmatprep.subr.mxu0 0.0
        %371 = vmatpush1.msra.mxu0 0.0
        %372 = vmatprep.subr.mxu0 0.0
        %373 = vmatpush1.msra.mxu0 0.0
        %374 = vmatprep.mubr.f32.mxu0 0.0
        %375 = vmatmul.mubr.f32.gmra.mrb[0].mxu0 %v259
        %v376 = vpop.f32.mrb[0].mxu0
        %v377 = vadd.f32 %v255, %v376
        %v378 = vpop.f32.mrb[0].mxu0
        %379 = vmatprep.mubr.f32.mxu0 0.0
        %380 = vmatmul.mubr.f32.gmra.mrb[0].mxu0 %v262
        %v381 = vpop.f32.mrb[0].mxu0
        %v382 = vadd.f32 %v255, %v381
        %v383 = vpop.f32.mrb[0].mxu0
        %384 = vmatprep.mubr.f32.mxu0 0.0
        %385 = vmatmul.mubr.f32.gmra.mrb[0].mxu0 %v265
        %v386 = vpop.f32.mrb[0].mxu0
        %v387 = vadd.f32 %v255, %v386
        %v388 = vpop.f32.mrb[0].mxu0
        %389 = vmatprep.mubr.f32.mxu0 0.0
        %390 = vmatmul.mubr.f32.gmra.mrb[0].mxu0 %v268
        %v391 = vpop.f32.mrb[0].mxu0
        %v392 = vadd.f32 %v255, %v391
        %v393 = vpop.f32.mrb[0].mxu0
        %394 = vmatprep.mubr.f32.mxu0 0.0
        %395 = vmatmul.mubr.f32.gmra.mrb[0].mxu0 %v271
        %v396 = vpop.f32.mrb[0].mxu0
        %v397 = vadd.f32 %v255, %v396
        %v398 = vpop.f32.mrb[0].mxu0
        %399 = vmatprep.mubr.f32.mxu0 0.0
        %400 = vmatmul.mubr.f32.gmra.mrb[0].mxu0 %v274
        %v401 = vpop.f32.mrb[0].mxu0
        %v402 = vadd.f32 %v255, %v401
        %v403 = vpop.f32.mrb[0].mxu0
        %404 = vmatprep.mubr.f32.mxu0 0.0
        %405 = vmatmul.mubr.f32.gmra.mrb[0].mxu0 %v277
        %v406 = vpop.f32.mrb[0].mxu0
        %v407 = vadd.f32 %v255, %v406
        %v408 = vpop.f32.mrb[0].mxu0
        %409 = vmatprep.mubr.f32.mxu0 0.0
        %410 = vmatmul.mubr.f32.gmra.mrb[0].mxu0 %v280
        %v411 = vpop.f32.mrb[0].mxu0
        %v412 = vadd.f32 %v255, %v411
        %v413 = vpop.f32.mrb[0].mxu0
        %414 = vmatprep.mubr.f32.mxu0 0.0
        %415 = vmatmul.mubr.f32.gmra.mrb[0].mxu0 %v283
        %v416 = vpop.f32.mrb[0].mxu0
        %v417 = vadd.f32 %v255, %v416
        %v418 = vpop.f32.mrb[0].mxu0
        %419 = vmatprep.mubr.f32.mxu0 0.0
        %420 = vmatmul.mubr.f32.gmra.mrb[0].mxu0 %v286
        %v421 = vpop.f32.mrb[0].mxu0
        %v422 = vadd.f32 %v255, %v421
        %v423 = vpop.f32.mrb[0].mxu0
        %424 = vmatprep.mubr.f32.mxu0 0.0
        %425 = vmatmul.mubr.f32.gmra.mrb[0].mxu0 %v289
        %v426 = vpop.f32.mrb[0].mxu0
        %v427 = vadd.f32 %v255, %v426
        %v428 = vpop.f32.mrb[0].mxu0
        %429 = vmatprep.mubr.f32.mxu0 0.0
        %430 = vmatmul.mubr.f32.gmra.mrb[0].mxu0 %v292
        %v431 = vpop.f32.mrb[0].mxu0
        %v432 = vadd.f32 %v255, %v431
        %v433 = vpop.f32.mrb[0].mxu0
        %434 = vmatprep.mubr.f32.mxu0 0.0
        %435 = vmatmul.mubr.f32.gmra.mrb[0].mxu0 %v295
        %v436 = vpop.f32.mrb[0].mxu0
        %v437 = vadd.f32 %v255, %v436
        %v438 = vpop.f32.mrb[0].mxu0
        %439 = vmatprep.mubr.f32.mxu0 0.0
        %440 = vmatmul.mubr.f32.gmra.mrb[0].mxu0 %v298
        %v441 = vpop.f32.mrb[0].mxu0
        %v442 = vadd.f32 %v255, %v441
        %v443 = vpop.f32.mrb[0].mxu0
        %444 = vmatprep.mubr.f32.mxu0 0.0
        %445 = vmatmul.mubr.f32.gmra.mrb[0].mxu0 %v301
        %v446 = vpop.f32.mrb[0].mxu0
        %v447 = vadd.f32 %v255, %v446
        %v448 = vpop.f32.mrb[0].mxu0
        %449 = vmatprep.mubr.f32.mxu0 0.0
        %450 = vmatmul.mubr.f32.gmra.mrb[0].mxu0 %v304
        %v451 = vpop.f32.mrb[0].mxu0
        %v452 = vadd.f32 %v255, %v451
        %v453 = vpop.f32.mrb[0].mxu0
        %454 = vdwg.mxu0
        %vm455 = vcmp.ge.f32.partialorder %v377, 0.0
        %vm456 = vcmp.ge.f32.partialorder %v382, 0.0
        %vm457 = vcmp.ge.f32.partialorder %v387, 0.0
        %vm458 = vcmp.ge.f32.partialorder %v392, 0.0
        %vm459 = vcmp.ge.f32.partialorder %v397, 0.0
        %vm460 = vcmp.ge.f32.partialorder %v402, 0.0
        %vm461 = vcmp.ge.f32.partialorder %v407, 0.0
        %vm462 = vcmp.ge.f32.partialorder %v412, 0.0
        %vm463 = vcmp.ge.f32.partialorder %v417, 0.0
        %vm464 = vcmp.ge.f32.partialorder %v422, 0.0
        %vm465 = vcmp.ge.f32.partialorder %v427, 0.0
        %vm466 = vcmp.ge.f32.partialorder %v432, 0.0
        %vm467 = vcmp.ge.f32.partialorder %v437, 0.0
        %vm468 = vcmp.ge.f32.partialorder %v442, 0.0
        %vm469 = vcmp.ge.f32.partialorder %v447, 0.0
        %vm470 = vcmp.ge.f32.partialorder %v452, 0.0
        %v471 = vmul.f32 %v377, 0.01
        %v472 = vmul.f32 %v382, 0.01
        %v473 = vmul.f32 %v387, 0.01
        %v474 = vmul.f32 %v392, 0.01
        %v475 = vmul.f32 %v397, 0.01
        %v476 = vmul.f32 %v402, 0.01
        %v477 = vmul.f32 %v407, 0.01
        %v478 = vmul.f32 %v412, 0.01
        %v479 = vmul.f32 %v417, 0.01
        %v480 = vmul.f32 %v422, 0.01
        %v481 = vmul.f32 %v427, 0.01
        %v482 = vmul.f32 %v432, 0.01
        %v483 = vmul.f32 %v437, 0.01
        %v484 = vmul.f32 %v442, 0.01
        %v485 = vmul.f32 %v447, 0.01
        %v486 = vmul.f32 %v452, 0.01
        %v487 = vsel %vm455, %v377, %v471
        %v488 = vsel %vm456, %v382, %v472
        %v489 = vsel %vm457, %v387, %v473
        %v490 = vsel %vm458, %v392, %v474
        %v491 = vsel %vm459, %v397, %v475
        %v492 = vsel %vm460, %v402, %v476
        %v493 = vsel %vm461, %v407, %v477
        %v494 = vsel %vm462, %v412, %v478
        %v495 = vsel %vm463, %v417, %v479
        %v496 = vsel %vm464, %v422, %v480
        %v497 = vsel %vm465, %v427, %v481
        %v498 = vsel %vm466, %v432, %v482
        %v499 = vsel %vm467, %v437, %v483
        %v500 = vsel %vm468, %v442, %v484
        %v501 = vsel %vm469, %v447, %v485
        %v502 = vsel %vm470, %v452, %v486
        %v503 = vld [vmem:[%s3] sm:$0x1]
        %s504 = sld [smem:[#allocation2]]
        %v505 = vstv %s504
        %vm506 = vcmask 80896
        %v508 = vsel %vm506, %v503, 0
        %v511 = vsel %vm506, %v487, 0
        %v514 = vsel %vm506, %v488, 0
        %v517 = vsel %vm506, %v489, 0
        %v520 = vsel %vm506, %v490, 0
        %v523 = vsel %vm506, %v491, 0
        %v526 = vsel %vm506, %v492, 0
        %v529 = vsel %vm506, %v493, 0
        %v532 = vsel %vm506, %v494, 0
        %v535 = vsel %vm506, %v495, 0
        %v538 = vsel %vm506, %v496, 0
        %v541 = vsel %vm506, %v497, 0
        %v544 = vsel %vm506, %v498, 0
        %v547 = vsel %vm506, %v499, 0
        %v550 = vsel %vm506, %v500, 0
        %v553 = vsel %vm506, %v501, 0
        %v556 = vsel %vm506, %v502, 0
        %558 = vmatprep.subr.mxu0 0.0
        %559 = vmatpush1.xpose.msra.mxu0 %v511
        %560 = vmatprep.subr.mxu0 0.0
        %561 = vmatpush1.xpose.msra.mxu0 %v514
        %562 = vmatprep.subr.mxu0 0.0
        %563 = vmatpush1.xpose.msra.mxu0 %v517
        %564 = vmatprep.subr.mxu0 0.0
        %565 = vmatpush1.xpose.msra.mxu0 %v520
        %566 = vmatprep.subr.mxu0 0.0
        %567 = vmatpush1.xpose.msra.mxu0 %v523
        %568 = vmatprep.subr.mxu0 0.0
        %569 = vmatpush1.xpose.msra.mxu0 %v526
        %570 = vmatprep.subr.mxu0 0.0
        %571 = vmatpush1.xpose.msra.mxu0 %v529
        %572 = vmatprep.subr.mxu0 0.0
        %573 = vmatpush1.xpose.msra.mxu0 %v532
        %574 = vmatprep.subr.mxu0 0.0
        %575 = vmatpush1.xpose.msra.mxu0 %v535
        %576 = vmatprep.subr.mxu0 0.0
        %577 = vmatpush1.xpose.msra.mxu0 %v538
        %578 = vmatprep.subr.mxu0 0.0
        %579 = vmatpush1.xpose.msra.mxu0 %v541
        %580 = vmatprep.subr.mxu0 0.0
        %581 = vmatpush1.xpose.msra.mxu0 %v544
        %582 = vmatprep.subr.mxu0 0.0
        %583 = vmatpush1.xpose.msra.mxu0 %v547
        %584 = vmatprep.subr.mxu0 0.0
        %585 = vmatpush1.xpose.msra.mxu0 %v550
        %586 = vmatprep.subr.mxu0 0.0
        %587 = vmatpush1.xpose.msra.mxu0 %v553
        %588 = vmatprep.subr.mxu0 0.0
        %589 = vmatpush1.xpose.msra.mxu0 %v556
        %590 = vmatprep.subr.mxu0 0.0
        %591 = vmatpush1.xpose.msra.mxu0 0.0
        %592 = vmatprep.subr.mxu0 0.0
        %593 = vmatpush1.xpose.msra.mxu0 0.0
        %594 = vmatprep.subr.mxu0 0.0
        %595 = vmatpush1.xpose.msra.mxu0 0.0
        %596 = vmatprep.subr.mxu0 0.0
        %597 = vmatpush1.xpose.msra.mxu0 0.0
        %598 = vmatprep.subr.mxu0 0.0
        %599 = vmatpush1.xpose.msra.mxu0 0.0
        %600 = vmatprep.subr.mxu0 0.0
        %601 = vmatpush1.xpose.msra.mxu0 0.0
        %602 = vmatprep.subr.mxu0 0.0
        %603 = vmatpush1.xpose.msra.mxu0 0.0
        %604 = vmatprep.subr.mxu0 0.0
        %605 = vmatpush1.xpose.msra.mxu0 0.0
        %606 = vmatprep.subr.mxu0 0.0
        %607 = vmatpush1.xpose.msra.mxu0 0.0
        %608 = vmatprep.subr.mxu0 0.0
        %609 = vmatpush1.xpose.msra.mxu0 0.0
        %610 = vmatprep.subr.mxu0 0.0
        %611 = vmatpush1.xpose.msra.mxu0 0.0
        %612 = vmatprep.subr.mxu0 0.0
        %613 = vmatpush1.xpose.msra.mxu0 0.0
        %614 = vmatprep.subr.mxu0 0.0
        %615 = vmatpush1.xpose.msra.mxu0 0.0
        %616 = vmatprep.subr.mxu0 0.0
        %617 = vmatpush1.xpose.msra.mxu0 0.0
        %618 = vmatprep.subr.mxu0 0.0
        %619 = vmatpush1.xpose.msra.mxu0 0.0
        %620 = vmatprep.subr.mxu0 0.0
        %621 = vmatpush1.xpose.msra.mxu0 0.0
        %622 = vmatprep.mubr.f32.mxu0 0.0
        %623 = vmatmul.mubr.f32.gmra.mrb[0].mxu0 %v508
        %v624 = vpop.f32.mrb[0].mxu0
        %v625 = vadd.f32 %v505, %v624
        %v626 = vpop.f32.mrb[0].mxu0
        %627 = vdwg.mxu0
        %628 = vst [vmem:[%s218] sm:$0x1] %v625
        %s629 = sand.u32 %s138, 1
        %s630 = scalar_lea.sflag [#allocation4], %s629
        %s631 = sand.u32 %s138, 1
        %s632 = scalar_lea.vmem [#allocation3], %s631
        // Predicated region
        $region41: #{tpu_custom_call.1} parent=39 // pred_check
          %p633 = pneg %p148
        $region42: #{tpu_custom_call.1} parent=39 // pred_check_branch
          %635 = sbr.rel (%p633) target = $region44
        $region43: #{tpu_custom_call.1} parent=39 // pred_region
          %s637 = ssub.s32 16, 16
          %638 = vsyncadd %s630, %s637
          %s639 = smul.addr %s20, 16
          %s640 = scalar_lea.hbm %s5, %s639
          %s642 = sshll.u32 %s632, 4
          %s643 = int_to_ptr.vmem [resolvable:$true] %s642
          %645 = dma.vmem_to_hbm [thread:$0]  %s643, 16, %s640, %s630
        $region44: #{tpu_custom_call.1} parent=39 // pred_fallthru
          _
      $region40: #{tpu_custom_call.1} parent=5 // pred_fallthru
        _
      %p646 = scmp.le.s32.totalorder 2, %s15
      // Predicated region
      $region45: #{tpu_custom_call.1} parent=5 // pred_check
        %p647 = pneg %p646
      $region46: #{tpu_custom_call.1} parent=5 // pred_check_branch
        %649 = sbr.rel (%p647) target = $region48
      $region47: #{tpu_custom_call.1} parent=5 // pred_region
        %s650 = ssub.s32 %s15, 2
        // Predicated region
        $region49: #{tpu_custom_call.1} parent=47 // pred_check
          %p651 = pneg %p154
        $region50: #{tpu_custom_call.1} parent=47 // pred_check_branch
          %653 = sbr.rel (%p651) target = $region52
        $region51: #{tpu_custom_call.1} parent=47 // pred_region
          %s654 = sand.u32 %s139, 1
          %s655 = scalar_lea.sflag [#allocation4], %s654
          %s656 = sand.u32 %s139, 1
          %s657 = scalar_lea.vmem [#allocation3], %s656
          %658 = dma.done %s655, 16
        $region52: #{tpu_custom_call.1} parent=47 // pred_fallthru
          _
      $region48: #{tpu_custom_call.1} parent=5 // pred_fallthru
        _
    $region6: #{tpu_custom_call.1} parent=1 // loop_footer
      %s19 = sadd.s32 1, %s15
    $region7: #{tpu_custom_call.1} parent=1 // loop_footer_branch
      %14 = sbr.rel target = $region3
    $region8: #{tpu_custom_call.1} parent=1 // loop_exit
      _
    %659 = vsyncpa [#allocation4], 1
    %s660 = scalar_lea.sflag [#allocation4], 1
    %661 = vsyncpa %s660, 1

</llo_original>
